<compile_context>
chip_gen: v6e
topology: v6e:2x2x1
jax: 0.10.0
libtpu: 0.0.40
codegen_flags: <defaults>
</compile_context>

<pallas_src>
import functools

import jax
import jax.numpy as jnp
from jax import lax
from jax.experimental import pallas as pl
from jax.experimental.pallas import tpu as pltpu


def _round_up(x, m):
    return (x + m - 1) // m * m


def _cdiv(a, b):
    return -(-a // b)


def _mrrmse_fast_kernel(p_ref, t_ref, rmse_ref, *, inv_cols):
    # Whole feature axis in one block (block width == true d, so no masking).
    diff = p_ref[...].astype(jnp.float32) - t_ref[...].astype(jnp.float32)
    ss = jnp.sum(diff * diff, axis=1, keepdims=True)          # (tm, 1)
    rmse_ref[...] = jnp.sqrt(ss * jnp.float32(inv_cols))


def _mrrmse_tiled_kernel(p_ref, t_ref, rmse_ref, acc_ref, *,
                         inv_cols, d_valid, td, mask_cols):
    # Feature axis tiled across grid axis j (innermost, "arbitrary").
    j = pl.program_id(1)

    diff = p_ref[...].astype(jnp.float32) - t_ref[...].astype(jnp.float32)
    d2 = diff * diff
    if mask_cols:
        # Last column tile reads past d: zero the garbage lanes exactly.
        col = j * td + lax.broadcasted_iota(jnp.int32, d2.shape, 1)
        d2 = jnp.where(col < d_valid, d2, jnp.float32(0.0))

    # Lane-partial accumulation: sum 128-lane slices with pure VPU adds; the
    # only cross-lane (XLU) reduce happens once, at the last column step.
    partial = d2[:, 0:128]
    for c in range(1, td // 128):
        partial = partial + d2[:, c * 128:(c + 1) * 128]

    @pl.when(j == 0)
    def _():
        acc_ref[...] = jnp.zeros_like(acc_ref)

    acc_ref[...] += partial

    @pl.when(j == pl.num_programs(1) - 1)
    def _():
        ss = jnp.sum(acc_ref[...], axis=1, keepdims=True)     # (tm, 1)
        rmse_ref[...] = jnp.sqrt(ss * jnp.float32(inv_cols))


def mrrmse_loss(predictions, targets, *, target_tile_bytes=4 * 1024 * 1024,
                max_td=16384):
    """Pallas implementation of CustomLoss.forward (mean row-wise RMSE)."""
    assert predictions.shape == targets.shape
    assert predictions.ndim == 2
    n, d = predictions.shape
    in_dtype = predictions.dtype
    itemsize = jnp.dtype(in_dtype).itemsize
    sub = 16 if itemsize == 2 else 8           # sublane multiple (bf16 packs 16)

    d_lane = _round_up(d, 128)                 # physical lane width of one row
    single_col = d_lane <= max_td

    if single_col:
        td = d                                 # full feature axis in one block
        lanes = d_lane
    else:
        n_ct = _cdiv(d_lane, max_td)
        td = _round_up(_cdiv(d_lane, n_ct), 128)
        lanes = td
    row_bytes = lanes * itemsize

    # ---- row (sublane) tiling: ~target_tile_bytes per input tile, no padding.
    if n <= sub:
        tm = n                                 # block dim == full array dim
    else:
        tm = max(sub, (target_tile_bytes // row_bytes) // sub * sub)
        tm = min(tm, _round_up(n, sub))
        if tm >= n:                            # ensure >=2 row tiles (v7x megacore)
            tm = _round_up(_cdiv(n, 2), sub)
    n_row_tiles = _cdiv(n, tm)

    inv_cols = 1.0 / d

    # VMEM budget: 2 inputs x 2 pipeline buffers x tile + f32 intermediates +
    # lane-partial accumulator + output tile.  Cap at 48 MiB (v7x headroom;
    # v5e/v6e have 128 MiB so this only raises their 16/32 MiB defaults).
    tile_bytes = tm * lanes * itemsize
    vmem_need = 2 * 2 * tile_bytes + 2 * tm * lanes * 4 + tm * 128 * 4 + tm * 4
    vmem_limit = int(min(48 * 2**20, max(2 * vmem_need, 32 * 2**20)))

    cost = pl.CostEstimate(
        flops=3 * n * d,
        transcendentals=n,
        bytes_accessed=2 * n * d * itemsize + n * 4,
    )

    if single_col:
        kernel = functools.partial(_mrrmse_fast_kernel, inv_cols=inv_cols)
        grid_spec = pltpu.PrefetchScalarGridSpec(
            num_scalar_prefetch=0,
            grid=(n_row_tiles,),
            in_specs=[
                pl.BlockSpec((tm, td), lambda i: (i, 0)),
                pl.BlockSpec((tm, td), lambda i: (i, 0)),
            ],
            out_specs=pl.BlockSpec((tm, 1), lambda i: (i, 0)),
        )
        dim_sem = ("parallel",)
    else:
        n_col_tiles = _cdiv(d, td)
        kernel = functools.partial(
            _mrrmse_tiled_kernel, inv_cols=inv_cols, d_valid=d, td=td,
            mask_cols=(d % td != 0))
        grid_spec = pltpu.PrefetchScalarGridSpec(
            num_scalar_prefetch=0,
            grid=(n_row_tiles, n_col_tiles),
            in_specs=[
                pl.BlockSpec((tm, td), lambda i, j: (i, j)),
                pl.BlockSpec((tm, td), lambda i, j: (i, j)),
            ],
            out_specs=pl.BlockSpec((tm, 1), lambda i, j: (i, 0)),
            scratch_shapes=[pltpu.VMEM((tm, 128), jnp.float32)],
        )
        dim_sem = ("parallel", "arbitrary")

    rmse = pl.pallas_call(
        kernel,
        out_shape=jax.ShapeDtypeStruct((n, 1), jnp.float32),
        grid_spec=grid_spec,
        compiler_params=pltpu.CompilerParams(
            dimension_semantics=dim_sem,
            vmem_limit_bytes=vmem_limit,
        ),
        cost_estimate=cost,
    )(predictions, targets)

    # Ragged last row tile: out-of-range rows are clipped on writeback, so the
    # (n, 1) output holds exactly the n true per-row RMSEs.
    return jnp.sum(rmse) / n


if __name__ == "__main__":
    def ref_loss(p, t):
        return jnp.mean(jnp.sqrt(jnp.mean((p - t) ** 2, axis=1)))

    key = jax.random.PRNGKey(0)
    kp, kt = jax.random.split(key)

    # 1) fast path: whole feature axis in one block, 2 "parallel" row tiles, f32
    N, D = 16, 256
    predictions = jax.random.normal(kp, (N, D), dtype=jnp.float32)
    targets = jax.random.normal(kt, (N, D), dtype=jnp.float32)
    loss = mrrmse_loss(predictions, targets)
    jax.block_until_ready(loss)
    assert jnp.allclose(loss, ref_loss(predictions, targets),
                        rtol=1e-5, atol=1e-5), (loss,)

    # 2) column-tiled path with ragged row & column tiles (in-kernel masking)
    N2, D2 = 20, 300
    p2 = jax.random.normal(jax.random.PRNGKey(1), (N2, D2), dtype=jnp.float32)
    t2 = jax.random.normal(jax.random.PRNGKey(2), (N2, D2), dtype=jnp.float32)
    loss2 = mrrmse_loss(p2, t2, max_td=128)
    jax.block_until_ready(loss2)
    assert jnp.allclose(loss2, ref_loss(p2, t2), rtol=1e-5, atol=1e-5), (loss2,)

    # 3) fast path, n <= sublane multiple, non-128-multiple feature dim
    N3, D3 = 6, 200
    p3 = jax.random.normal(jax.random.PRNGKey(3), (N3, D3), dtype=jnp.float32)
    t3 = jax.random.normal(jax.random.PRNGKey(4), (N3, D3), dtype=jnp.float32)
    loss3 = mrrmse_loss(p3, t3)
    jax.block_until_ready(loss3)
    assert jnp.allclose(loss3, ref_loss(p3, t3), rtol=1e-5, atol=1e-5), (loss3,)

    # 4) bf16 inputs (half the HBM traffic); accumulation stays f32 in-kernel
    pb = predictions.astype(jnp.bfloat16)
    tb = targets.astype(jnp.bfloat16)
    loss4 = mrrmse_loss(pb, tb)
    jax.block_until_ready(loss4)
    ref4 = ref_loss(pb.astype(jnp.float32), tb.astype(jnp.float32))
    assert jnp.allclose(loss4, ref4, rtol=1e-4, atol=1e-4), (loss4, ref4)

    print("KERNEL_OK")
</pallas_src>

<mosaic_0001>
module attributes {stable_mosaic.version = 11 : i64} {
  func.func @_mrrmse_fast_kernel(%arg0: i32, %arg1: memref<8x256xf32, #tpu.memory_space<vmem>>, %arg2: memref<8x256xf32, #tpu.memory_space<vmem>>, %arg3: memref<8x1xf32, #tpu.memory_space<vmem>>) attributes {dimension_semantics = [#tpu.dimension_semantics<parallel>], iteration_bounds = array<i64: 2>, scalar_prefetch = 0 : i64, scratch_operands = 0 : i64, tpu.core_type = #tpu.core_type<tc>, window_params = [{transform_indices = @transform_0, window_bounds = array<i64: 8, 256>}, {transform_indices = @transform_1, window_bounds = array<i64: 8, 256>}, {transform_indices = @transform_2, window_bounds = array<i64: 8, 1>}]} {
    %c0 = arith.constant 0 : index
    %c0_0 = arith.constant 0 : index
    %0 = vector.load %arg1[%c0, %c0_0] : memref<8x256xf32, #tpu.memory_space<vmem>>, vector<8x256xf32>
    %c0_1 = arith.constant 0 : index
    %c0_2 = arith.constant 0 : index
    %1 = vector.load %arg2[%c0_1, %c0_2] : memref<8x256xf32, #tpu.memory_space<vmem>>, vector<8x256xf32>
    %2 = arith.subf %0, %1 : vector<8x256xf32>
    %3 = arith.mulf %2, %2 : vector<8x256xf32>
    %cst = arith.constant dense<0.000000e+00> : vector<8xf32>
    %4 = vector.multi_reduction <add>, %3, %cst [1] : vector<8x256xf32> to vector<8xf32>
    %5 = vector.shape_cast %4 : vector<8xf32> to vector<8x1xf32>
    %cst_3 = arith.constant 3.906250e-03 : f32
    %6 = vector.broadcast %cst_3 : f32 to vector<8x1xf32>
    %7 = arith.mulf %5, %6 : vector<8x1xf32>
    %8 = math.sqrt %7 : vector<8x1xf32>
    %c0_4 = arith.constant 0 : index
    %c0_5 = arith.constant 0 : index
    %9 = vector.load %arg3[%c0_4, %c0_5] : memref<8x1xf32, #tpu.memory_space<vmem>>, vector<8x1xf32>
    tpu.vector_store %arg3[%c0_4, %c0_5], %8 {strides = array<i32>} : memref<8x1xf32, #tpu.memory_space<vmem>>, vector<8x1xf32>,
    return
  }
  func.func @transform_0(%arg0: i32) -> (i32, i32) {
    %c0_i32 = arith.constant 0 : i32
    %c0_i32_0 = arith.constant 0 : i32
    return %arg0, %c0_i32 : i32, i32
  }
  func.func @transform_1(%arg0: i32) -> (i32, i32) {
    %c0_i32 = arith.constant 0 : i32
    %c0_i32_0 = arith.constant 0 : i32
    return %arg0, %c0_i32 : i32, i32
  }
  func.func @transform_2(%arg0: i32) -> (i32, i32) {
    %c0_i32 = arith.constant 0 : i32
    %c0_i32_0 = arith.constant 0 : i32
    return %arg0, %c0_i32 : i32, i32
  }
}

</mosaic_0001>

<llo_original>
// kernel: tpu_custom_call.1
$region0: #{tpu_custom_call.1}
  #allocation0 [shape = 'u32[]', space=smem, size = 0x4, offset = 0x4, fixed_abs, tag = 'smem constant byte address 0x4 - core index']
  #allocation1 [shape = 'u32[144,128]{1,0:T(1,128)}', space=vmem, size = 0x12000, scoped, tag = 'internal scratch']
  %s0 = inlined_call_operand.hbm [shape: f32[16,256], index: 0, kind: input, shape index: {}]
  %s1 = inlined_call_operand.hbm [shape: f32[16,256], index: 1, kind: input, shape index: {}]
  %s2 = inlined_call_operand.vmem [shape: f32[16,1], index: 2, kind: output, shape index: {}]
  %s3 = sld [smem:[#allocation0]]
  $region49: #{tpu_custom_call.1} parent=0
    _
  %s5 = ssub.s32 1, %s3
  %s6 = scalar_select 0, %s5, %s3
  $region1: #{tpu_custom_call.1} parent=0
    #allocation2 [shape = 'u8[16384]{0}', space=vmem, size = 0x4000, scoped, tag = 'input window, operand 0']
    #allocation3 [shape = 's32[2]{0}', space=sflag, size = 0x8, scoped, tag = 'scoped memory for tpu_custom_call.1']
    #allocation4 [shape = 'u8[16384]{0}', space=vmem, size = 0x4000, scoped, tag = 'input window, operand 1']
    #allocation5 [shape = 's32[2]{0}', space=sflag, size = 0x8, scoped, tag = 'scoped memory for tpu_custom_call.1']
    %7 = vsyncpa [#allocation3], 0
    %s8 = scalar_lea.sflag [#allocation3], 1
    %9 = vsyncpa %s8, 0
    %10 = vsyncpa [#allocation5], 0
    %s11 = scalar_lea.sflag [#allocation5], 1
    %12 = vsyncpa %s11, 0
    loop: start=0, step=1, limit=4
    $region2: #{tpu_custom_call.1} parent=1 // loop_pre_header
      _
    $region3: #{tpu_custom_call.1} parent=1 // loop_header
      %s14 = sphi 0, %s18
      %p15 = scmp.ge.s32.totalorder %s14, 4
      %s24 = sphi 0, %s26
      %s27 = sphi 0, %s24
      %s28 = sphi 0, %s27
      %s44 = sphi 0, %s28
      %s50 = sphi 0, %s52
      %s53 = sphi 0, %s50
      %s54 = sphi 0, %s53
      %s70 = sphi 0, %s54
      %s76 = sphi 0, %s78
      %s79 = sphi 0, %s76
      %s80 = sphi 0, %s79
      %s96 = sphi 0, %s80
    $region4: #{tpu_custom_call.1} parent=1 // loop_header_branch
      %17 = sbr.rel (%p15) target = $region8
    $region5: #{tpu_custom_call.1} parent=1 // loop_body
      %s19 = ssub.s32 %s14, 1
      %s20 = ssub.s32 %s14, 2
      %s21 = sadd.s32 %s14, 1
      %s22 = ssub.s32 %s14, %s21
      %p23 = scmp.eq.s32.totalorder %s22, 0
      %s25 = sadd.s32 %s24, 1
      %s26 = scalar_select %p23, %s24, %s25
      %p29 = pneg %p23
      %p30 = scmp.eq.s32.totalorder %s14, 1
      %p31 = por %p29, %p30
      %p32 = scmp.ne.s32.totalorder %s24, %s27
      %p33 = scmp.eq.s32.totalorder %s14, 0
      %p34 = por %p32, %p33
      %p35 = scmp.ne.s32.totalorder %s24, %s27
      %p36 = scmp.eq.s32.totalorder %s19, 1
      %p37 = por %p35, %p36
      %p38 = scmp.ne.s32.totalorder %s27, %s28
      %p39 = scmp.eq.s32.totalorder %s19, 0
      %p40 = por %p38, %p39
      %p41 = scmp.ne.s32.totalorder %s27, %s28
      %p42 = scmp.eq.s32.totalorder %s20, 1
      %p43 = por %p41, %p42
      %p45 = scmp.ne.s32.totalorder %s28, %s44
      %p46 = scmp.eq.s32.totalorder %s20, 0
      %p47 = por %p45, %p46
      %s48 = ssub.s32 %s14, %s21
      %p49 = scmp.eq.s32.totalorder %s48, 0
      %s51 = sadd.s32 %s50, 1
      %s52 = scalar_select %p49, %s50, %s51
      %p55 = pneg %p49
      %p56 = scmp.eq.s32.totalorder %s14, 1
      %p57 = por %p55, %p56
      %p58 = scmp.ne.s32.totalorder %s50, %s53
      %p59 = scmp.eq.s32.totalorder %s14, 0
      %p60 = por %p58, %p59
      %p61 = scmp.ne.s32.totalorder %s50, %s53
      %p62 = scmp.eq.s32.totalorder %s19, 1
      %p63 = por %p61, %p62
      %p64 = scmp.ne.s32.totalorder %s53, %s54
      %p65 = scmp.eq.s32.totalorder %s19, 0
      %p66 = por %p64, %p65
      %p67 = scmp.ne.s32.totalorder %s53, %s54
      %p68 = scmp.eq.s32.totalorder %s20, 1
      %p69 = por %p67, %p68
      %p71 = scmp.ne.s32.totalorder %s54, %s70
      %p72 = scmp.eq.s32.totalorder %s20, 0
      %p73 = por %p71, %p72
      %s74 = ssub.s32 %s14, %s21
      %p75 = scmp.eq.s32.totalorder %s74, 0
      %s77 = sadd.s32 %s76, 1
      %s78 = scalar_select %p75, %s76, %s77
      %p81 = pneg %p75
      %p82 = scmp.eq.s32.totalorder %s14, 1
      %p83 = por %p81, %p82
      %p84 = scmp.ne.s32.totalorder %s76, %s79
      %p85 = scmp.eq.s32.totalorder %s14, 0
      %p86 = por %p84, %p85
      %p87 = scmp.ne.s32.totalorder %s76, %s79
      %p88 = scmp.eq.s32.totalorder %s19, 1
      %p89 = por %p87, %p88
      %p90 = scmp.ne.s32.totalorder %s79, %s80
      %p91 = scmp.eq.s32.totalorder %s19, 0
      %p92 = por %p90, %p91
      %p93 = scmp.ne.s32.totalorder %s79, %s80
      %p94 = scmp.eq.s32.totalorder %s20, 1
      %p95 = por %p93, %p94
      %p97 = scmp.ne.s32.totalorder %s80, %s96
      %p98 = scmp.eq.s32.totalorder %s20, 0
      %p99 = por %p97, %p98
      %p100 = scmp.le.s32.totalorder 1, %s14
      %p101 = scmp.lt.s32.totalorder %s14, 3
      %p102 = pnand %p100, %p101
      %p103 = pneg %p102
      // Predicated region
      $region9: #{tpu_custom_call.1} parent=5 // pred_check
        _
      $region10: #{tpu_custom_call.1} parent=5 // pred_check_branch
        %105 = sbr.rel (%p102) target = $region12
      $region11: #{tpu_custom_call.1} parent=5 // pred_region
        %s106 = ssub.s32 %s14, 1
      $region12: #{tpu_custom_call.1} parent=5 // pred_fallthru
        _
      %p107 = scmp.lt.s32.totalorder %s14, 2
      // Predicated region
      $region13: #{tpu_custom_call.1} parent=5 // pred_check
        %p108 = pneg %p107
      $region14: #{tpu_custom_call.1} parent=5 // pred_check_branch
        %110 = sbr.rel (%p108) target = $region16
      $region15: #{tpu_custom_call.1} parent=5 // pred_region
        // Predicated region
        $region17: #{tpu_custom_call.1} parent=15 // pred_check
          %p111 = pneg %p34
        $region18: #{tpu_custom_call.1} parent=15 // pred_check_branch
          %113 = sbr.rel (%p111) target = $region20
        $region19: #{tpu_custom_call.1} parent=15 // pred_region
          %s114 = sand.u32 %s24, 1
          %s115 = scalar_lea.sflag [#allocation3], %s114
          %s116 = sand.u32 %s24, 1
          %s117 = smul.addr %s116, 16
          %s118 = scalar_lea.vmem [#allocation2], %s117
          %s120 = ssub.s32 256, 256
          %121 = vsyncadd %s115, %s120
          %s122 = smul.addr %s14, 2
          %s123 = smul.addr %s122, 128
          %s124 = scalar_lea.hbm %s0, %s123
          %s126 = sshll.u32 %s118, 4
          %s127 = int_to_ptr.vmem [resolvable:$true] %s126
          %129 = dma.hbm_to_vmem [thread:$0]  %s124, 256, %s127, %s115
        $region20: #{tpu_custom_call.1} parent=15 // pred_fallthru
          _
        // Predicated region
        $region21: #{tpu_custom_call.1} parent=15 // pred_check
          %p130 = pneg %p60
        $region22: #{tpu_custom_call.1} parent=15 // pred_check_branch
          %132 = sbr.rel (%p130) target = $region24
        $region23: #{tpu_custom_call.1} parent=15 // pred_region
          %s133 = sand.u32 %s50, 1
          %s134 = scalar_lea.sflag [#allocation5], %s133
          %s135 = sand.u32 %s50, 1
          %s136 = smul.addr %s135, 16
          %s137 = scalar_lea.vmem [#allocation4], %s136
          %s139 = ssub.s32 256, 256
          %140 = vsyncadd %s134, %s139
          %s141 = smul.addr %s14, 2
          %s142 = smul.addr %s141, 128
          %s143 = scalar_lea.hbm %s1, %s142
          %s145 = sshll.u32 %s137, 4
          %s146 = int_to_ptr.vmem [resolvable:$true] %s145
          %148 = dma.hbm_to_vmem [thread:$0]  %s143, 256, %s146, %s134
        $region24: #{tpu_custom_call.1} parent=15 // pred_fallthru
          _
      $region16: #{tpu_custom_call.1} parent=5 // pred_fallthru
        _
      %p149 = scmp.le.s32.totalorder 1, %s14
      %p150 = scmp.lt.s32.totalorder %s14, 3
      %p151 = pnand %p149, %p150
      %p152 = pneg %p151
      // Predicated region
      $region25: #{tpu_custom_call.1} parent=5 // pred_check
        _
      $region26: #{tpu_custom_call.1} parent=5 // pred_check_branch
        %154 = sbr.rel (%p151) target = $region28
      $region27: #{tpu_custom_call.1} parent=5 // pred_region
        %s155 = ssub.s32 %s14, 1
        %s156 = sand.u32 %s27, 1
        %s157 = scalar_lea.sflag [#allocation3], %s156
        %s158 = sand.u32 %s27, 1
        %s159 = smul.addr %s158, 16
        %s160 = scalar_lea.vmem [#allocation2], %s159
        // Predicated region
        $region29: #{tpu_custom_call.1} parent=27 // pred_check
          %p161 = pneg %p40
        $region30: #{tpu_custom_call.1} parent=27 // pred_check_branch
          %163 = sbr.rel (%p161) target = $region32
        $region31: #{tpu_custom_call.1} parent=27 // pred_region
          %164 = dma.done %s157, 256
        $region32: #{tpu_custom_call.1} parent=27 // pred_fallthru
          _
        %s165 = sand.u32 %s53, 1
        %s166 = scalar_lea.sflag [#allocation5], %s165
        %s167 = sand.u32 %s53, 1
        %s168 = smul.addr %s167, 16
        %s169 = scalar_lea.vmem [#allocation4], %s168
        // Predicated region
        $region33: #{tpu_custom_call.1} parent=27 // pred_check
          %p170 = pneg %p66
        $region34: #{tpu_custom_call.1} parent=27 // pred_check_branch
          %172 = sbr.rel (%p170) target = $region36
        $region35: #{tpu_custom_call.1} parent=27 // pred_region
          %173 = dma.done %s166, 256
        $region36: #{tpu_custom_call.1} parent=27 // pred_fallthru
          _
        %s174 = sand.u32 %s27, 1
        %s175 = scalar_lea.sflag [#allocation3], %s174
        %s176 = sand.u32 %s27, 1
        %s177 = smul.addr %s176, 16
        %s178 = scalar_lea.vmem [#allocation2], %s177
        %p179 = pneg %p40
        %p180 = pneg %p37
        %s181 = sand.u32 %s53, 1
        %s182 = scalar_lea.sflag [#allocation5], %s181
        %s183 = sand.u32 %s53, 1
        %s184 = smul.addr %s183, 16
        %s185 = scalar_lea.vmem [#allocation4], %s184
        %p186 = pneg %p66
        %p187 = pneg %p63
        %p188 = pneg %p92
        %p189 = pneg %p89
        %p190 = scmp.lt.s32.totalorder %s19, 1
        %s191 = scalar_select %p190, %s19, 1
        %s192 = smul.addr %s191, 8
        %s193 = scalar_lea.vmem %s2, %s192
        %p194 = scmp.lt.s32.totalorder %s19, 1
        %s195 = scalar_select %p194, %s19, 1
        %s196 = smul.addr %s195, 8
        %s197 = scalar_lea.vmem %s2, %s196
        %v198 = vld [vmem:[%s160] sm:$0xff]
        %v199 = vld [vmem:[%s160 + $0x8] sm:$0xff]
        %v200 = vld [vmem:[%s169] sm:$0xff]
        %v201 = vld [vmem:[%s169 + $0x8] sm:$0xff]
        %v202 = vsub.f32 %v198, %v200
        %v203 = vsub.f32 %v199, %v201
        %v204 = vmul.f32 %v202, %v202
        %v205 = vmul.f32 %v203, %v203
        %v206 = vadd.f32 %v204, %v205
        %207 = vadd.xlane.f32.xlu0 %v206
        %v208 = vpop.xlane.xlu0 %207
        %v209 = vmul.f32 %v208, 0.00390625
        %v210 = vrsqrt.pop %v209
        %v211 = vmul.f32 %v209, %v210
        %vm212 = vcmp.eq.f32.partialorder %v209, inf
        %v213 = vsel %vm212, %v209, %v211
        %vm214 = vcmp.eq.f32.partialorder %v209, 0.0
        %v215 = vand.u32 %v209, 2147483648
        %v216 = vsel %vm214, %v215, %v213
        %vm217 = vcmask 7168
        %218 = vst.msk [vmem:[%s197] sm:$0xff] %vm217, %v216
        %p219 = scmp.lt.s32.totalorder %s19, 1
        %s220 = scalar_select %p219, %s19, 1
        %s221 = smul.addr %s220, 8
        %s222 = scalar_lea.vmem %s2, %s221
        // Predicated region
        $region37: #{tpu_custom_call.1} parent=27 // pred_check
          %p223 = pneg %p89
        $region38: #{tpu_custom_call.1} parent=27 // pred_check_branch
          %225 = sbr.rel (%p223) target = $region40
        $region39: #{tpu_custom_call.1} parent=27 // pred_region
          _
        $region40: #{tpu_custom_call.1} parent=27 // pred_fallthru
          _
      $region28: #{tpu_custom_call.1} parent=5 // pred_fallthru
        _
      %p226 = scmp.le.s32.totalorder 2, %s14
      // Predicated region
      $region41: #{tpu_custom_call.1} parent=5 // pred_check
        %p227 = pneg %p226
      $region42: #{tpu_custom_call.1} parent=5 // pred_check_branch
        %229 = sbr.rel (%p227) target = $region44
      $region43: #{tpu_custom_call.1} parent=5 // pred_region
        %s230 = ssub.s32 %s14, 2
        // Predicated region
        $region45: #{tpu_custom_call.1} parent=43 // pred_check
          %p231 = pneg %p95
        $region46: #{tpu_custom_call.1} parent=43 // pred_check_branch
          %233 = sbr.rel (%p231) target = $region48
        $region47: #{tpu_custom_call.1} parent=43 // pred_region
          %p234 = scmp.lt.s32.totalorder %s20, 1
          %s235 = scalar_select %p234, %s20, 1
          %s236 = smul.addr %s235, 8
          %s237 = scalar_lea.vmem %s2, %s236
        $region48: #{tpu_custom_call.1} parent=43 // pred_fallthru
          _
      $region44: #{tpu_custom_call.1} parent=5 // pred_fallthru
        _
    $region6: #{tpu_custom_call.1} parent=1 // loop_footer
      %s18 = sadd.s32 1, %s14
    $region7: #{tpu_custom_call.1} parent=1 // loop_footer_branch
      %13 = sbr.rel target = $region3
    $region8: #{tpu_custom_call.1} parent=1 // loop_exit
      _
    %238 = vsyncpa [#allocation3], 1
    %s239 = scalar_lea.sflag [#allocation3], 1
    %240 = vsyncpa %s239, 1
    %241 = vsyncpa [#allocation5], 1
    %s242 = scalar_lea.sflag [#allocation5], 1
    %243 = vsyncpa %s242, 1

</llo_original>
